<compile_context>
chip_gen: v6e
topology: v6e:2x2x1
jax: 0.10.0
libtpu: 0.0.40
codegen_flags: <defaults>
</compile_context>

<pallas_src>
import functools

import jax
import jax.numpy as jnp
from jax.experimental import pallas as pl
from jax.experimental.pallas import tpu as pltpu


def _round_up(x, m):
    return ((x + m - 1) // m) * m


def _vmem_cap_bytes():
    """~75% of physical VMEM; conservative 64 MiB (v7x) fallback if unqueryable."""
    try:
        cap = int(pltpu.get_tpu_info().vmem_capacity_bytes)
    except Exception:
        cap = 64 * 1024 * 1024
    return int(0.75 * cap)


def _sublane_for(dtype):
    isz = jnp.dtype(dtype).itemsize
    if isz >= 4:
        return 8
    if isz == 2:
        return 16
    return 32


def _pick_tile_m(M, tile_m, sublane):
    cap = max(sublane, _round_up(min(tile_m, M), sublane))
    if M % sublane == 0:
        # Prefer a tile that divides M exactly -> no row padding / output slice copy.
        tm = cap
        while tm >= sublane:
            if M % tm == 0:
                return tm
            tm -= sublane
    return cap


def _pick_tile_n(V, tile_n, D, tile_m, itemsize, out_itemsize, vmem_cap):
    # Cap tn so the double-buffered working set fits the VMEM budget:
    #   2*(tm*D)*isz + 2*(D*tn + tn)*isz + 2*(tm*tn)*out_isz <= vmem_cap
    fixed = 2 * tile_m * D * itemsize
    per_tn = 2 * (D + 1) * itemsize + 2 * tile_m * out_itemsize
    avail = vmem_cap - fixed
    max_tn = 128 if avail <= per_tn * 128 else (avail // per_tn) // 128 * 128
    tile_n = max(128, min(tile_n, max_tn))

    cap = max(128, _round_up(min(tile_n, V), 128))
    if V % 128 == 0:
        # Prefer a multiple of 128 that divides V exactly -> no vocab padding / slice copy.
        tn = cap
        while tn >= 128:
            if V % tn == 0:
                return tn
            tn -= 128
    return cap


def prepare_generator_params(weight, bias, *, compute_dtype=None, tile_n=2048, tile_m=512):
    """One-time prep (do NOT call per forward): transpose weight to (D, V), cast to
    compute_dtype, pad V once, and build a 2-D f32 bias. Returns (w_t, b2d, tn, V)."""
    V, D = weight.shape
    w_t = weight.T  # (D, V) -> plain (tm,D)x(D,tn) MXU matmul in-kernel, no transpose.
    if compute_dtype is not None:
        w_t = w_t.astype(compute_dtype)
    itemsize = jnp.dtype(w_t.dtype).itemsize
    tn = _pick_tile_n(V, tile_n, D, tile_m, itemsize, 4, _vmem_cap_bytes())
    Vp = _round_up(V, tn)

    b = bias.astype(jnp.float32)
    if Vp != V:
        w_t = jnp.pad(w_t, ((0, 0), (0, Vp - V)))
        b = jnp.pad(b, (0, Vp - V))
    b2d = b.reshape(1, Vp)
    return w_t, b2d, tn, V


def _generator_kernel(x_ref, w_ref, b_ref, o_ref):
    # x_ref: (tm, D)  w_ref: (D, tn)  b_ref: (1, tn)  o_ref: (tm, tn)
    acc = jnp.dot(x_ref[...], w_ref[...], preferred_element_type=jnp.float32)
    o_ref[...] = (acc + b_ref[...]).astype(o_ref.dtype)


@functools.partial(jax.jit, static_argnames=("tn", "vocab", "tile_m", "out_dtype"))
def generator_forward(x, w_t, b2d, *, tn, vocab, tile_m=512, out_dtype=None):
    """Forward of Generator. x:(B,T,D); w_t:(D,Vp), b2d:(1,Vp) from prepare_generator_params."""
    B, T, D = x.shape
    D_w, Vp = w_t.shape
    assert D == D_w, "weight feature dim must match x feature dim"
    assert Vp % tn == 0
    M = B * T

    out_dtype = jnp.dtype(out_dtype) if out_dtype is not None else x.dtype
    compute_dtype = w_t.dtype
    itemsize = jnp.dtype(compute_dtype).itemsize
    out_itemsize = jnp.dtype(out_dtype).itemsize

    x2d = x.reshape(M, D).astype(compute_dtype)

    sublane = _sublane_for(compute_dtype)
    tm = _pick_tile_m(M, tile_m, sublane)
    Mp = _round_up(M, tm)
    if Mp != M:
        x2d = jnp.pad(x2d, ((0, Mp - M), (0, 0)))

    grid = (Vp // tn, Mp // tm)  # vocab outer: weight tile reused across all row tiles.

    # Scoped-VMEM request: real double-buffered working set (+ small headroom), capped
    # below physical VMEM so pipelining buffers keep headroom (important on v7x's 64 MiB).
    working = (
        2 * (tm * D + D * tn + tn) * itemsize   # x tile, weight tile, bias tile
        + 2 * tm * tn * out_itemsize            # output tile
    )
    vmem_limit = int(min(_vmem_cap_bytes(), max(32 * 1024 * 1024, working + (4 << 20))))

    out2d = pl.pallas_call(
        _generator_kernel,
        out_shape=jax.ShapeDtypeStruct((Mp, Vp), out_dtype),
        grid_spec=pltpu.PrefetchScalarGridSpec(
            num_scalar_prefetch=0,
            grid=grid,
            in_specs=[
                pl.BlockSpec((tm, D), lambda j, i: (i, 0)),   # row tile of x (re-read per vocab tile)
                pl.BlockSpec((D, tn), lambda j, i: (0, j)),   # vocab tile of transposed weight
                pl.BlockSpec((1, tn), lambda j, i: (0, j)),   # bias tile
            ],
            out_specs=pl.BlockSpec((tm, tn), lambda j, i: (i, j)),
        ),
        compiler_params=pltpu.CompilerParams(
            dimension_semantics=("parallel", "parallel"),
            vmem_limit_bytes=vmem_limit,
        ),
        cost_estimate=pl.CostEstimate(
            flops=2 * Mp * D * Vp,
            transcendentals=0,
            bytes_accessed=(
                Mp * D * itemsize * (Vp // tn)   # x is re-read once per vocab tile
                + Vp * D * itemsize              # weight streamed once
                + Mp * Vp * out_itemsize         # logits written once
            ),
        ),
    )(x2d, w_t, b2d)

    if Mp == M and Vp == vocab:
        out2d = out2d  # no padding -> no slice copy
    else:
        out2d = out2d[:M, :vocab]
    return out2d.reshape(B, T, vocab)


if __name__ == "__main__":
    # Small shapes consistent with the module: (batch, seq, d_model) -> (batch, seq, vocab).
    # V=96 deliberately NOT a multiple of 128 to exercise the padding path.
    B, T, D, V = 2, 8, 32, 96

    key = jax.random.PRNGKey(0)
    kx, kw, kb = jax.random.split(key, 3)

    x = jax.random.normal(kx, (B, T, D), dtype=jnp.float32)
    # nn.Linear(d_model, vocab): weight (V, D), bias (V,)
    weight = jax.random.normal(kw, (V, D), dtype=jnp.float32) * 0.02
    bias = jax.random.normal(kb, (V,), dtype=jnp.float32) * 0.01

    ref = x @ weight.T + bias

    # f32 path: tight tolerance.
    w_f32, b2d_f32, tn_f32, vocab = prepare_generator_params(weight, bias)
    out = generator_forward(x, w_f32, b2d_f32, tn=tn_f32, vocab=vocab)
    out = jax.block_until_ready(out)
    assert out.shape == (B, T, V)
    assert jnp.allclose(out, ref, atol=1e-5, rtol=1e-5)

    # bf16-operand / f32-accumulate path (fast config on v5e/v6e/v7x): loose tolerance.
    w_bf16, b2d_bf16, tn_bf16, vocab = prepare_generator_params(
        weight, bias, compute_dtype=jnp.bfloat16
    )
    out_bf16 = generator_forward(x, w_bf16, b2d_bf16, tn=tn_bf16, vocab=vocab)
    out_bf16 = jax.block_until_ready(out_bf16)
    assert out_bf16.shape == (B, T, V)
    assert out_bf16.dtype == x.dtype
    assert jnp.allclose(out_bf16, ref, atol=2e-2, rtol=2e-2)

    # bf16 logits output (halves the dominant output HBM stream).
    out_bf16_o = generator_forward(
        x, w_bf16, b2d_bf16, tn=tn_bf16, vocab=vocab, out_dtype=jnp.bfloat16
    )
    out_bf16_o = jax.block_until_ready(out_bf16_o)
    assert out_bf16_o.dtype == jnp.bfloat16
    assert jnp.allclose(out_bf16_o.astype(jnp.float32), ref, atol=3e-2, rtol=3e-2)

    print("KERNEL_OK")
</pallas_src>

<mosaic_0001>
module attributes {stable_mosaic.version = 11 : i64} {
  func.func @_generator_kernel(%arg0: i32, %arg1: i32, %arg2: memref<16x32xf32, #tpu.memory_space<vmem>>, %arg3: memref<32x128xf32, #tpu.memory_space<vmem>>, %arg4: memref<1x128xf32, #tpu.memory_space<vmem>>, %arg5: memref<16x128xf32, #tpu.memory_space<vmem>>) attributes {dimension_semantics = [#tpu.dimension_semantics<parallel>, #tpu.dimension_semantics<parallel>], iteration_bounds = array<i64: 1, 1>, scalar_prefetch = 0 : i64, scratch_operands = 0 : i64, tpu.core_type = #tpu.core_type<tc>, window_params = [{transform_indices = @transform_0, window_bounds = array<i64: 16, 32>}, {transform_indices = @transform_1, window_bounds = array<i64: 32, 128>}, {transform_indices = @transform_2, window_bounds = array<i64: 1, 128>}, {transform_indices = @transform_3, window_bounds = array<i64: 16, 128>}]} {
    %c0 = arith.constant 0 : index
    %c0_0 = arith.constant 0 : index
    %0 = vector.load %arg2[%c0, %c0_0] : memref<16x32xf32, #tpu.memory_space<vmem>>, vector<16x32xf32>
    %c0_1 = arith.constant 0 : index
    %c0_2 = arith.constant 0 : index
    %1 = vector.load %arg3[%c0_1, %c0_2] : memref<32x128xf32, #tpu.memory_space<vmem>>, vector<32x128xf32>
    %cst = arith.constant dense<0.000000e+00> : vector<16x128xf32>
    %2 = tpu.matmul %0, %1, %cst {dimension_numbers = #tpu.dot_dimension_numbers<[1], [0], [0], [1], [0, 0, 1, 1], [], []>} : vector<16x32xf32>, vector<32x128xf32>, vector<16x128xf32> -> vector<16x128xf32>
    %c0_3 = arith.constant 0 : index
    %c0_4 = arith.constant 0 : index
    %3 = vector.load %arg4[%c0_3, %c0_4] : memref<1x128xf32, #tpu.memory_space<vmem>>, vector<1x128xf32>
    %4 = vector.broadcast %3 : vector<1x128xf32> to vector<16x128xf32>
    %5 = arith.addf %2, %4 : vector<16x128xf32>
    %c0_5 = arith.constant 0 : index
    %c0_6 = arith.constant 0 : index
    %6 = vector.load %arg5[%c0_5, %c0_6] : memref<16x128xf32, #tpu.memory_space<vmem>>, vector<16x128xf32>
    tpu.vector_store %arg5[%c0_5, %c0_6], %5 {strides = array<i32>} : memref<16x128xf32, #tpu.memory_space<vmem>>, vector<16x128xf32>,
    return
  }
  func.func @transform_0(%arg0: i32, %arg1: i32) -> (i32, i32) {
    %c0_i32 = arith.constant 0 : i32
    %c0_i32_0 = arith.constant 0 : i32
    return %arg1, %c0_i32 : i32, i32
  }
  func.func @transform_1(%arg0: i32, %arg1: i32) -> (i32, i32) {
    %c0_i32 = arith.constant 0 : i32
    %c0_i32_0 = arith.constant 0 : i32
    return %c0_i32, %arg0 : i32, i32
  }
  func.func @transform_2(%arg0: i32, %arg1: i32) -> (i32, i32) {
    %c0_i32 = arith.constant 0 : i32
    %c0_i32_0 = arith.constant 0 : i32
    return %c0_i32, %arg0 : i32, i32
  }
  func.func @transform_3(%arg0: i32, %arg1: i32) -> (i32, i32) {
    %c0_i32 = arith.constant 0 : i32
    return %arg1, %arg0 : i32, i32
  }
}

</mosaic_0001>

<llo_original>
// kernel: generator_forward.1
$region0: #{generator_forward.1}
  #allocation0 [shape = 'u32[]', space=smem, size = 0x4, offset = 0x4, fixed_abs, tag = 'smem constant byte address 0x4 - core index']
  #allocation1 [shape = 'u32[144,128]{1,0:T(1,128)}', space=vmem, size = 0x12000, scoped, tag = 'internal scratch']
  %s0 = inlined_call_operand.hbm [shape: f32[16,32], index: 0, kind: input, shape index: {}]
  %s1 = inlined_call_operand.hbm [shape: f32[32,128], index: 1, kind: input, shape index: {}]
  %s2 = inlined_call_operand.vmem [shape: f32[1,128], index: 2, kind: input, shape index: {}]
  %s3 = inlined_call_operand.vmem [shape: f32[16,128], index: 3, kind: output, shape index: {}]
  %s4 = sld [smem:[#allocation0]]
  $region30: #{generator_forward.1} parent=0
    _
  %s6 = ssub.s32 1, %s4
  %s7 = scalar_select 0, %s6, %s4
  $region1: #{generator_forward.1} parent=0
    #allocation2 [shape = 'u8[8192]{0}', space=vmem, size = 0x2000, scoped, tag = 'input window, operand 0, single buffered']
    #allocation3 [shape = 's32[1]{0}', space=sflag, size = 0x4, scoped, tag = 'scoped memory for generator_forward.1']
    #allocation4 [shape = 'u8[16384]{0}', space=vmem, size = 0x4000, scoped, tag = 'input window, operand 1, single buffered']
    #allocation5 [shape = 's32[1]{0}', space=sflag, size = 0x4, scoped, tag = 'scoped memory for generator_forward.1']
    %8 = vsyncpa [#allocation3], 0
    %9 = vsyncpa [#allocation5], 0
    // Predicated region
    $region2: #{generator_forward.1} parent=1 // pred_check
      _
    $region3: #{generator_forward.1} parent=1 // pred_check_branch
      %11 = sbr.rel (0) target = $region5
    $region4: #{generator_forward.1} parent=1 // pred_region
      %s13 = ssub.s32 256, 256
      %14 = vsyncadd [#allocation3], %s13
      %s15 = sshll.u32 [#allocation2], 4
      %s16 = int_to_ptr.vmem [resolvable:$true] %s15
      %21 = dma.hbm_to_vmem [thread:$0]  %s0, 256, %s16, [#allocation3], 128, 128, 8
    $region5: #{generator_forward.1} parent=1 // pred_fallthru
      _
    // Predicated region
    $region6: #{generator_forward.1} parent=1 // pred_check
      _
    $region7: #{generator_forward.1} parent=1 // pred_check_branch
      %23 = sbr.rel (0) target = $region9
    $region8: #{generator_forward.1} parent=1 // pred_region
      %s25 = ssub.s32 512, 512
      %26 = vsyncadd [#allocation5], %s25
      %s27 = sshll.u32 [#allocation4], 4
      %s28 = int_to_ptr.vmem [resolvable:$true] %s27
      %33 = dma.hbm_to_vmem [thread:$0]  %s1, 512, %s28, [#allocation5], 128, 128, 8
    $region9: #{generator_forward.1} parent=1 // pred_fallthru
      _
    // Predicated region
    $region10: #{generator_forward.1} parent=1 // pred_check
      _
    $region11: #{generator_forward.1} parent=1 // pred_check_branch
      %35 = sbr.rel (0) target = $region13
    $region12: #{generator_forward.1} parent=1 // pred_region
      _
    $region13: #{generator_forward.1} parent=1 // pred_fallthru
      _
    // Predicated region
    $region14: #{generator_forward.1} parent=1 // pred_check
      _
    $region15: #{generator_forward.1} parent=1 // pred_check_branch
      %37 = sbr.rel (0) target = $region17
    $region16: #{generator_forward.1} parent=1 // pred_region
      %38 = dma.done [#allocation3], 256
    $region17: #{generator_forward.1} parent=1 // pred_fallthru
      _
    // Predicated region
    $region18: #{generator_forward.1} parent=1 // pred_check
      _
    $region19: #{generator_forward.1} parent=1 // pred_check_branch
      %40 = sbr.rel (0) target = $region21
    $region20: #{generator_forward.1} parent=1 // pred_region
      %41 = dma.done [#allocation5], 512
    $region21: #{generator_forward.1} parent=1 // pred_fallthru
      _
    %v42 = vld [vmem:[#allocation2] sm:$0xff]
    %v43 = vld [vmem:[#allocation2 + $0x8] sm:$0xff]
    %v44 = vld [vmem:[#allocation4] sm:$0xff]
    %v45 = vld [vmem:[#allocation4 + $0x8] sm:$0xff]
    %v46 = vld [vmem:[#allocation4 + $0x10] sm:$0xff]
    %v47 = vld [vmem:[#allocation4 + $0x18] sm:$0xff]
    %v48 = vld [vmem:[%s2] sm:$0x1]
    %v50 = vlaneseq
    %v51 = vshrl.u32 %v50, 7
    %v52 = vsub.s32 0, %v51
    %v53 = vrot.slane %v48, %v52
    %vm55 = vcmask 261120
    %v57 = vsel %vm55, %v42, 0
    %v60 = vsel %vm55, %v43, 0
    %62 = vmatprep.subr.mxu0 0.0
    %63 = vmatpush1.msra.mxu0 0.0
    %64 = vmatprep.subr.mxu0 0.0
    %65 = vmatpush1.msra.mxu0 0.0
    %66 = vmatprep.subr.mxu0 0.0
    %67 = vmatpush1.msra.mxu0 0.0
    %68 = vmatprep.subr.mxu0 0.0
    %69 = vmatpush1.msra.mxu0 0.0
    %70 = vmatprep.subr.mxu0 0.0
    %71 = vmatpush1.msra.mxu0 0.0
    %72 = vmatprep.subr.mxu0 0.0
    %73 = vmatpush1.msra.mxu0 0.0
    %74 = vmatprep.subr.mxu0 0.0
    %75 = vmatpush1.msra.mxu0 0.0
    %76 = vmatprep.subr.mxu0 0.0
    %77 = vmatpush1.msra.mxu0 0.0
    %78 = vmatprep.subr.mxu0 0.0
    %79 = vmatpush1.msra.mxu0 0.0
    %80 = vmatprep.subr.mxu0 0.0
    %81 = vmatpush1.msra.mxu0 0.0
    %82 = vmatprep.subr.mxu0 0.0
    %83 = vmatpush1.msra.mxu0 0.0
    %84 = vmatprep.subr.mxu0 0.0
    %85 = vmatpush1.msra.mxu0 0.0
    %86 = vmatprep.subr.mxu0 0.0
    %87 = vmatpush1.msra.mxu0 %v47
    %88 = vmatprep.subr.mxu0 0.0
    %89 = vmatpush1.msra.mxu0 %v46
    %90 = vmatprep.subr.mxu0 0.0
    %91 = vmatpush1.msra.mxu0 %v45
    %92 = vmatprep.subr.mxu0 0.0
    %93 = vmatpush1.msra.mxu0 %v44
    %94 = vmatprep.subr.mxu0 0.0
    %95 = vmatpush2.msra.mxu0 0.0
    %96 = vmatprep.subr.mxu0 0.0
    %97 = vmatpush2.msra.mxu0 0.0
    %98 = vmatprep.subr.mxu0 0.0
    %99 = vmatpush2.msra.mxu0 0.0
    %100 = vmatprep.subr.mxu0 0.0
    %101 = vmatpush2.msra.mxu0 0.0
    %102 = vmatprep.subr.mxu0 0.0
    %103 = vmatpush2.msra.mxu0 0.0
    %104 = vmatprep.subr.mxu0 0.0
    %105 = vmatpush2.msra.mxu0 0.0
    %106 = vmatprep.subr.mxu0 0.0
    %107 = vmatpush2.msra.mxu0 0.0
    %108 = vmatprep.subr.mxu0 0.0
    %109 = vmatpush2.msra.mxu0 0.0
    %110 = vmatprep.subr.mxu0 0.0
    %111 = vmatpush2.msra.mxu0 0.0
    %112 = vmatprep.subr.mxu0 0.0
    %113 = vmatpush2.msra.mxu0 0.0
    %114 = vmatprep.subr.mxu0 0.0
    %115 = vmatpush2.msra.mxu0 0.0
    %116 = vmatprep.subr.mxu0 0.0
    %117 = vmatpush2.msra.mxu0 0.0
    %118 = vmatprep.subr.mxu0 0.0
    %119 = vmatpush2.msra.mxu0 0.0
    %120 = vmatprep.subr.mxu0 0.0
    %121 = vmatpush2.msra.mxu0 0.0
    %122 = vmatprep.subr.mxu0 0.0
    %123 = vmatpush2.msra.mxu0 0.0
    %124 = vmatprep.subr.mxu0 0.0
    %125 = vmatpush2.msra.mxu0 0.0
    %126 = vmatprep.mubr.f32.mxu0 0.0
    %127 = vmatmul.mubr.f32.gmra.mxu0 %v57
    %v128 = vpop.f32.mrf.mxu0
    %v129 = vadd.f32 %v53, %v128
    %v130 = vpop.f32.mrf.mxu0
    %131 = vmatprep.mubr.f32.mxu0 0.0
    %132 = vmatmul.mubr.f32.gmra.mxu0 %v60
    %v133 = vpop.f32.mrf.mxu0
    %v134 = vadd.f32 %v53, %v133
    %v135 = vpop.f32.mrf.mxu0
    %136 = vdwg.mxu0
    %137 = vst [vmem:[%s3] sm:$0xff] %v129
    %138 = vst [vmem:[%s3 + $0x8] sm:$0xff] %v134
    // Predicated region
    $region22: #{generator_forward.1} parent=1 // pred_check
      _
    $region23: #{generator_forward.1} parent=1 // pred_check_branch
      %140 = sbr.rel (0) target = $region25
    $region24: #{generator_forward.1} parent=1 // pred_region
      _
    $region25: #{generator_forward.1} parent=1 // pred_fallthru
      _
    // Predicated region
    $region26: #{generator_forward.1} parent=1 // pred_check
      _
    $region27: #{generator_forward.1} parent=1 // pred_check_branch
      %142 = sbr.rel (0) target = $region29
    $region28: #{generator_forward.1} parent=1 // pred_region
      _
    $region29: #{generator_forward.1} parent=1 // pred_fallthru
      _
    %143 = vsyncpa [#allocation3], 1
    %144 = vsyncpa [#allocation5], 1

</llo_original>
